<compile_context>
chip_gen: v6e
topology: v6e:2x2x1
jax: 0.10.0
libtpu: 0.0.40
codegen_flags: <defaults>
</compile_context>

<pallas_src>
import jax
import jax.numpy as jnp
from jax.experimental import pallas as pl
from jax.experimental.pallas import tpu as pltpu

NUM_FEATURES = 16
PACK = 8                                # batch rows per 128-lane row (8*16 = 128)
_L1, _L2, _L3 = 4, 8, 8                 # per-layer output widths
_P1, _P2, _P3 = PACK * _L1, PACK * _L2, PACK * _L3   # 32, 64, 64 packed lanes
_OUT_W = _P1 + _P2 + _P3                # 160 packed output lanes (no pad)
_IN_W = PACK * NUM_FEATURES             # 128 packed input lanes


def _round_up(x, m):
    return ((x + m - 1) // m) * m


# ----------------------------------------------------------------------------- kernel
def feature_model_kernel(x_ref, w1_ref, w2_ref, w3_ref, b_ref, o_ref):
    # x_ref: [TB, 128]   w1: [128, 32]   w2: [32, 64]   w3: [64, 64]
    # b_ref: [1, 160]    o_ref: [TB, 160]
    x = x_ref[...]
    b = b_ref[...]

    # Packed Linear 1: [TB,128] @ [128,32] + b1 (tiled 8x)
    h1 = jnp.dot(x, w1_ref[...], preferred_element_type=jnp.float32) + b[:, 0:_P1]
    # ReLU -> packed Linear 2: [TB,32] @ [32,64] + b2 (tiled 8x)
    h2 = jnp.dot(jnp.maximum(h1, 0.0), w2_ref[...],
                 preferred_element_type=jnp.float32) + b[:, _P1:_P1 + _P2]
    # ReLU -> packed Linear 3: [TB,64] @ [64,64] + b3 (tiled 8x)
    h3 = jnp.dot(jnp.maximum(h2, 0.0), w3_ref[...],
                 preferred_element_type=jnp.float32) + b[:, _P1 + _P2:_OUT_W]

    # Single fused writeback per tile (no pad lanes, no zeros materialized).
    o_ref[...] = jnp.concatenate([h1, h2, h3], axis=-1).astype(o_ref.dtype)


# ----------------------------------------------------------------------------- pallas path
def _forward_pallas(x, params, block_p=2048):
    """block_p = packed rows (each = 8 batch rows) per grid step."""
    B, F = x.shape
    assert F == NUM_FEATURES

    # Number of packed rows needed, then pick a tile that (a) is a multiple of
    # 8 sublanes, (b) gives a grid of >= 2 steps so both v7x TensorCores run,
    # (c) is capped by block_p to bound VMEM.
    P = pl.cdiv(B, PACK)
    TB = max(8, min(block_p, _round_up(pl.cdiv(P, 2), 8)))
    P_pad = _round_up(P, TB)
    B_pad = P_pad * PACK

    if B_pad != B:
        x = jnp.pad(x, ((0, B_pad - B), (0, 0)))   # zero-pad tail rows
    xp = x.reshape(P_pad, _IN_W)                   # pack 8 rows per 128-lane row

    # Pre-transpose PyTorch [out, in] weights to [in, out], then expand
    # block-diagonally so each layer is one lane-dense matmul in packed space.
    eye = jnp.eye(PACK, dtype=jnp.float32)
    w1 = jnp.kron(eye, params["w1"].T)             # [128, 32]
    w2 = jnp.kron(eye, params["w2"].T)             # [32,  64]
    w3 = jnp.kron(eye, params["w3"].T)             # [64,  64]

    # Fused bias row matching the packed/fused output layout.
    b_fused = jnp.concatenate(
        [jnp.tile(params["b1"], PACK),
         jnp.tile(params["b2"], PACK),
         jnp.tile(params["b3"], PACK)], axis=0).reshape(1, _OUT_W)

    grid = (P_pad // TB,)

    out = pl.pallas_call(
        feature_model_kernel,
        out_shape=jax.ShapeDtypeStruct((P_pad, _OUT_W), jnp.float32),
        grid_spec=pltpu.PrefetchScalarGridSpec(
            num_scalar_prefetch=0,
            grid=grid,
            in_specs=[
                # x: tiled over packed batch rows, fully lane-dense.
                pl.BlockSpec((TB, _IN_W), lambda i: (i, 0)),
                # Weights / bias: constant index_map -> stay resident in VMEM.
                pl.BlockSpec(w1.shape, lambda i: (0, 0)),
                pl.BlockSpec(w2.shape, lambda i: (0, 0)),
                pl.BlockSpec(w3.shape, lambda i: (0, 0)),
                pl.BlockSpec((1, _OUT_W), lambda i: (0, 0)),
            ],
            out_specs=pl.BlockSpec((TB, _OUT_W), lambda i: (i, 0)),
        ),
        compiler_params=pltpu.CompilerParams(
            dimension_semantics=("parallel",),     # shard batch loop across TCs
        ),
    )(xp, w1, w2, w3, b_fused)

    # Unpack: lane group [l*j : l*(j+1)] of packed row r is batch row 8r+j.
    o1 = out[:, 0:_P1].reshape(B_pad, _L1)[:B]
    o2 = out[:, _P1:_P1 + _P2].reshape(B_pad, _L2)[:B]
    o3 = out[:, _P1 + _P2:_OUT_W].reshape(B_pad, _L3)[:B]
    return o1, o2, o3


# ----------------------------------------------------------------------------- XLA fallback
def _forward_xla(x, params):
    h1 = x @ params["w1"].T + params["b1"]
    h2 = jnp.maximum(h1, 0.0) @ params["w2"].T + params["b2"]
    h3 = jnp.maximum(h2, 0.0) @ params["w3"].T + params["b3"]
    return h1, h2, h3


# ----------------------------------------------------------------------------- dispatcher
def feature_model_forward(x, params, *, use_pallas=None, block_p=2048):
    """x: [B, NUM_FEATURES] float32. Returns (out_lin1, out_lin2, out_lin3)."""
    B = x.shape[0]
    if use_pallas is None:
        # Pallas only pays off once per-step/launch overhead is amortized.
        use_pallas = B >= 4096
    if use_pallas:
        return _forward_pallas(x, params, block_p=block_p)
    return _forward_xla(x, params)


# ----------------------------------------------------------------------------- params
def xavier_normal(key, out_features, in_features):
    # torch.nn.init.xavier_normal_: std = sqrt(2 / (fan_in + fan_out)), gain = 1
    std = (2.0 / (in_features + out_features)) ** 0.5
    return std * jax.random.normal(key, (out_features, in_features), dtype=jnp.float32)


def init_params(key):
    k1, k2, k3 = jax.random.split(key, 3)
    return {
        "w1": xavier_normal(k1, 4, NUM_FEATURES),
        "b1": jnp.zeros((4,), jnp.float32),
        "w2": xavier_normal(k2, 8, 4),
        "b2": jnp.zeros((8,), jnp.float32),
        "w3": xavier_normal(k3, 8, 8),
        "b3": jnp.zeros((8,), jnp.float32),
    }


# ----------------------------------------------------------------------------- main
if __name__ == "__main__":
    key = jax.random.PRNGKey(0)
    kx, kx2, kp = jax.random.split(key, 3)
    params = init_params(kp)

    ok = True

    # 1) Pallas path, multi-step grid (B=512 -> 64 packed rows, TB=16 -> grid=(4,)).
    B = 512
    x = jax.random.normal(kx, (B, NUM_FEATURES), dtype=jnp.float32)
    outs = feature_model_forward(x, params, use_pallas=True, block_p=16)
    outs = jax.block_until_ready(outs)
    refs = _forward_xla(x, params)
    for o, r in zip(outs, refs):
        ok &= bool(jnp.allclose(o, r, atol=1e-5, rtol=1e-5))

    # 2) Pallas path with a ragged tail (B=200 -> 25 packed rows, pads to 32, grid=(4,)).
    B2 = 200
    x2 = jax.random.normal(kx2, (B2, NUM_FEATURES), dtype=jnp.float32)
    outs2 = feature_model_forward(x2, params, use_pallas=True, block_p=8)
    outs2 = jax.block_until_ready(outs2)
    refs2 = _forward_xla(x2, params)
    for o, r in zip(outs2, refs2):
        ok &= bool(jnp.allclose(o, r, atol=1e-5, rtol=1e-5))

    # 3) Default dispatcher at small batch falls back to XLA (no regression path).
    outs3 = jax.block_until_ready(feature_model_forward(x2, params))
    for o, r in zip(outs3, refs2):
        ok &= bool(jnp.allclose(o, r, atol=1e-5, rtol=1e-5))

    assert ok, "mismatch vs reference"
    print("KERNEL_OK")
</pallas_src>

<mosaic_0001>
module attributes {stable_mosaic.version = 11 : i64} {
  func.func @feature_model_kernel(%arg0: i32, %arg1: memref<16x128xf32, #tpu.memory_space<vmem>>, %arg2: memref<128x32xf32, #tpu.memory_space<vmem>>, %arg3: memref<32x64xf32, #tpu.memory_space<vmem>>, %arg4: memref<64x64xf32, #tpu.memory_space<vmem>>, %arg5: memref<1x160xf32, #tpu.memory_space<vmem>>, %arg6: memref<16x160xf32, #tpu.memory_space<vmem>>) attributes {dimension_semantics = [#tpu.dimension_semantics<parallel>], iteration_bounds = array<i64: 4>, scalar_prefetch = 0 : i64, scratch_operands = 0 : i64, tpu.core_type = #tpu.core_type<tc>, window_params = [{transform_indices = @transform_0, window_bounds = array<i64: 16, 128>}, {pipeline_mode = #tpu.pipeline_mode<synchronous>, transform_indices = @transform_1, window_bounds = array<i64: 128, 32>}, {pipeline_mode = #tpu.pipeline_mode<synchronous>, transform_indices = @transform_2, window_bounds = array<i64: 32, 64>}, {pipeline_mode = #tpu.pipeline_mode<synchronous>, transform_indices = @transform_3, window_bounds = array<i64: 64, 64>}, {pipeline_mode = #tpu.pipeline_mode<synchronous>, transform_indices = @transform_4, window_bounds = array<i64: 1, 160>}, {transform_indices = @transform_5, window_bounds = array<i64: 16, 160>}]} {
    %c0 = arith.constant 0 : index
    %c0_0 = arith.constant 0 : index
    %0 = vector.load %arg1[%c0, %c0_0] : memref<16x128xf32, #tpu.memory_space<vmem>>, vector<16x128xf32>
    %c0_1 = arith.constant 0 : index
    %c0_2 = arith.constant 0 : index
    %1 = vector.load %arg5[%c0_1, %c0_2] : memref<1x160xf32, #tpu.memory_space<vmem>>, vector<1x160xf32>
    %c0_3 = arith.constant 0 : index
    %c0_4 = arith.constant 0 : index
    %2 = vector.load %arg2[%c0_3, %c0_4] : memref<128x32xf32, #tpu.memory_space<vmem>>, vector<128x32xf32>
    %cst = arith.constant dense<0.000000e+00> : vector<16x32xf32>
    %3 = tpu.matmul %0, %2, %cst {dimension_numbers = #tpu.dot_dimension_numbers<[1], [0], [0], [1], [0, 0, 1, 1], [], []>} : vector<16x128xf32>, vector<128x32xf32>, vector<16x32xf32> -> vector<16x32xf32>
    %4 = vector.extract_strided_slice %1 {offsets = [0, 0], sizes = [1, 32], strides = [1, 1]} : vector<1x160xf32> to vector<1x32xf32>
    %5 = vector.broadcast %4 : vector<1x32xf32> to vector<16x32xf32>
    %6 = arith.addf %3, %5 : vector<16x32xf32>
    %cst_5 = arith.constant 0.000000e+00 : f32
    %7 = vector.broadcast %cst_5 : f32 to vector<16x32xf32>
    %8 = arith.maximumf %6, %7 : vector<16x32xf32>
    %c0_6 = arith.constant 0 : index
    %c0_7 = arith.constant 0 : index
    %9 = vector.load %arg3[%c0_6, %c0_7] : memref<32x64xf32, #tpu.memory_space<vmem>>, vector<32x64xf32>
    %cst_8 = arith.constant dense<0.000000e+00> : vector<16x64xf32>
    %10 = tpu.matmul %8, %9, %cst_8 {dimension_numbers = #tpu.dot_dimension_numbers<[1], [0], [0], [1], [0, 0, 1, 1], [], []>} : vector<16x32xf32>, vector<32x64xf32>, vector<16x64xf32> -> vector<16x64xf32>
    %11 = vector.extract_strided_slice %1 {offsets = [0, 32], sizes = [1, 64], strides = [1, 1]} : vector<1x160xf32> to vector<1x64xf32>
    %12 = vector.broadcast %11 : vector<1x64xf32> to vector<16x64xf32>
    %13 = arith.addf %10, %12 : vector<16x64xf32>
    %cst_9 = arith.constant 0.000000e+00 : f32
    %14 = vector.broadcast %cst_9 : f32 to vector<16x64xf32>
    %15 = arith.maximumf %13, %14 : vector<16x64xf32>
    %c0_10 = arith.constant 0 : index
    %c0_11 = arith.constant 0 : index
    %16 = vector.load %arg4[%c0_10, %c0_11] : memref<64x64xf32, #tpu.memory_space<vmem>>, vector<64x64xf32>
    %cst_12 = arith.constant dense<0.000000e+00> : vector<16x64xf32>
    %17 = tpu.matmul %15, %16, %cst_12 {dimension_numbers = #tpu.dot_dimension_numbers<[1], [0], [0], [1], [0, 0, 1, 1], [], []>} : vector<16x64xf32>, vector<64x64xf32>, vector<16x64xf32> -> vector<16x64xf32>
    %18 = vector.extract_strided_slice %1 {offsets = [0, 96], sizes = [1, 64], strides = [1, 1]} : vector<1x160xf32> to vector<1x64xf32>
    %19 = vector.broadcast %18 : vector<1x64xf32> to vector<16x64xf32>
    %20 = arith.addf %17, %19 : vector<16x64xf32>
    %21 = tpu.concatenate %6, %13, %20 in 1 : vector<16x32xf32>, vector<16x64xf32>, vector<16x64xf32> -> vector<16x160xf32>
    %c0_13 = arith.constant 0 : index
    %c0_14 = arith.constant 0 : index
    %22 = vector.load %arg6[%c0_13, %c0_14] : memref<16x160xf32, #tpu.memory_space<vmem>>, vector<16x160xf32>
    tpu.vector_store %arg6[%c0_13, %c0_14], %21 {strides = array<i32>} : memref<16x160xf32, #tpu.memory_space<vmem>>, vector<16x160xf32>,
    return
  }
  func.func @transform_0(%arg0: i32) -> (i32, i32) {
    %c0_i32 = arith.constant 0 : i32
    %c0_i32_0 = arith.constant 0 : i32
    return %arg0, %c0_i32 : i32, i32
  }
  func.func @transform_1(%arg0: i32) -> (i32, i32) {
    %c0_i32 = arith.constant 0 : i32
    %c0_i32_0 = arith.constant 0 : i32
    %c0_i32_1 = arith.constant 0 : i32
    return %c0_i32, %c0_i32_0 : i32, i32
  }
  func.func @transform_2(%arg0: i32) -> (i32, i32) {
    %c0_i32 = arith.constant 0 : i32
    %c0_i32_0 = arith.constant 0 : i32
    %c0_i32_1 = arith.constant 0 : i32
    return %c0_i32, %c0_i32_0 : i32, i32
  }
  func.func @transform_3(%arg0: i32) -> (i32, i32) {
    %c0_i32 = arith.constant 0 : i32
    %c0_i32_0 = arith.constant 0 : i32
    %c0_i32_1 = arith.constant 0 : i32
    return %c0_i32, %c0_i32_0 : i32, i32
  }
  func.func @transform_4(%arg0: i32) -> (i32, i32) {
    %c0_i32 = arith.constant 0 : i32
    %c0_i32_0 = arith.constant 0 : i32
    %c0_i32_1 = arith.constant 0 : i32
    return %c0_i32, %c0_i32_0 : i32, i32
  }
  func.func @transform_5(%arg0: i32) -> (i32, i32) {
    %c0_i32 = arith.constant 0 : i32
    %c0_i32_0 = arith.constant 0 : i32
    return %arg0, %c0_i32 : i32, i32
  }
}

</mosaic_0001>

<llo_original>
// kernel: tpu_custom_call.1
$region0: #{tpu_custom_call.1}
  #allocation0 [shape = 'u32[]', space=smem, size = 0x4, offset = 0x4, fixed_abs, tag = 'smem constant byte address 0x4 - core index']
  #allocation1 [shape = 'u32[144,128]{1,0:T(1,128)}', space=vmem, size = 0x12000, scoped, tag = 'internal scratch']
  %s0 = inlined_call_operand.vmem [shape: f32[64,128], index: 0, kind: input, shape index: {}]
  %s1 = inlined_call_operand.vmem [shape: f32[128,32], index: 1, kind: input, shape index: {}]
  %s2 = inlined_call_operand.vmem [shape: f32[32,64], index: 2, kind: input, shape index: {}]
  %s3 = inlined_call_operand.vmem [shape: f32[64,64], index: 3, kind: input, shape index: {}]
  %s4 = inlined_call_operand.vmem [shape: f32[1,160], index: 4, kind: input, shape index: {}]
  %s5 = inlined_call_operand.hbm [shape: f32[64,160], index: 5, kind: output, shape index: {}]
  %s6 = sld [smem:[#allocation0]]
  $region53: #{tpu_custom_call.1} parent=0
    _
  %s8 = ssub.s32 1, %s6
  %s9 = scalar_select 0, %s8, %s6
  $region1: #{tpu_custom_call.1} parent=0
    #allocation2 [shape = 'u8[32768]{0}', space=vmem, size = 0x8000, scoped, tag = 'output window, operand 0']
    #allocation3 [shape = 's32[2]{0}', space=sflag, size = 0x8, scoped, tag = 'scoped memory for tpu_custom_call.1']
    %10 = vsyncpa [#allocation3], 0
    %s11 = scalar_lea.sflag [#allocation3], 1
    %12 = vsyncpa %s11, 0
    loop: start=0, step=1, limit=6
    $region2: #{tpu_custom_call.1} parent=1 // loop_pre_header
      _
    $region3: #{tpu_custom_call.1} parent=1 // loop_header
      %s14 = sphi 0, %s18
      %p15 = scmp.ge.s32.totalorder %s14, 6
      %s24 = sphi 0, %s26
      %s27 = sphi 0, %s24
      %s28 = sphi 0, %s27
      %s44 = sphi 0, %s28
      %s48 = sphi 0, %s48
      %s50 = sphi 0, %s48
      %s51 = sphi 0, %s50
      %s65 = sphi 0, %s51
      %s69 = sphi 0, %s69
      %s71 = sphi 0, %s69
      %s72 = sphi 0, %s71
      %s86 = sphi 0, %s72
      %s90 = sphi 0, %s90
      %s92 = sphi 0, %s90
      %s93 = sphi 0, %s92
      %s107 = sphi 0, %s93
      %s111 = sphi 0, %s111
      %s113 = sphi 0, %s111
      %s114 = sphi 0, %s113
      %s128 = sphi 0, %s114
      %s134 = sphi 0, %s136
      %s137 = sphi 0, %s134
      %s138 = sphi 0, %s137
      %s154 = sphi 0, %s138
    $region4: #{tpu_custom_call.1} parent=1 // loop_header_branch
      %17 = sbr.rel (%p15) target = $region8
    $region5: #{tpu_custom_call.1} parent=1 // loop_body
      %s19 = ssub.s32 %s14, 1
      %s20 = ssub.s32 %s14, 2
      %s21 = sadd.s32 %s14, 1
      %s22 = ssub.s32 %s14, %s21
      %p23 = scmp.eq.s32.totalorder %s22, 0
      %s25 = sadd.s32 %s24, 1
      %s26 = scalar_select %p23, %s24, %s25
      %p29 = pneg %p23
      %p30 = scmp.eq.s32.totalorder %s14, 3
      %p31 = por %p29, %p30
      %p32 = scmp.ne.s32.totalorder %s24, %s27
      %p33 = scmp.eq.s32.totalorder %s14, 0
      %p34 = por %p32, %p33
      %p35 = scmp.ne.s32.totalorder %s24, %s27
      %p36 = scmp.eq.s32.totalorder %s19, 3
      %p37 = por %p35, %p36
      %p38 = scmp.ne.s32.totalorder %s27, %s28
      %p39 = scmp.eq.s32.totalorder %s19, 0
      %p40 = por %p38, %p39
      %p41 = scmp.ne.s32.totalorder %s27, %s28
      %p42 = scmp.eq.s32.totalorder %s20, 3
      %p43 = por %p41, %p42
      %p45 = scmp.ne.s32.totalorder %s28, %s44
      %p46 = scmp.eq.s32.totalorder %s20, 0
      %p47 = por %p45, %p46
      %s49 = sadd.s32 %s48, 1
      %p52 = scmp.eq.s32.totalorder %s14, 3
      %p53 = scmp.ne.s32.totalorder %s48, %s50
      %p54 = scmp.eq.s32.totalorder %s14, 0
      %p55 = por %p53, %p54
      %p56 = scmp.ne.s32.totalorder %s48, %s50
      %p57 = scmp.eq.s32.totalorder %s19, 3
      %p58 = por %p56, %p57
      %p59 = scmp.ne.s32.totalorder %s50, %s51
      %p60 = scmp.eq.s32.totalorder %s19, 0
      %p61 = por %p59, %p60
      %p62 = scmp.ne.s32.totalorder %s50, %s51
      %p63 = scmp.eq.s32.totalorder %s20, 3
      %p64 = por %p62, %p63
      %p66 = scmp.ne.s32.totalorder %s51, %s65
      %p67 = scmp.eq.s32.totalorder %s20, 0
      %p68 = por %p66, %p67
      %s70 = sadd.s32 %s69, 1
      %p73 = scmp.eq.s32.totalorder %s14, 3
      %p74 = scmp.ne.s32.totalorder %s69, %s71
      %p75 = scmp.eq.s32.totalorder %s14, 0
      %p76 = por %p74, %p75
      %p77 = scmp.ne.s32.totalorder %s69, %s71
      %p78 = scmp.eq.s32.totalorder %s19, 3
      %p79 = por %p77, %p78
      %p80 = scmp.ne.s32.totalorder %s71, %s72
      %p81 = scmp.eq.s32.totalorder %s19, 0
      %p82 = por %p80, %p81
      %p83 = scmp.ne.s32.totalorder %s71, %s72
      %p84 = scmp.eq.s32.totalorder %s20, 3
      %p85 = por %p83, %p84
      %p87 = scmp.ne.s32.totalorder %s72, %s86
      %p88 = scmp.eq.s32.totalorder %s20, 0
      %p89 = por %p87, %p88
      %s91 = sadd.s32 %s90, 1
      %p94 = scmp.eq.s32.totalorder %s14, 3
      %p95 = scmp.ne.s32.totalorder %s90, %s92
      %p96 = scmp.eq.s32.totalorder %s14, 0
      %p97 = por %p95, %p96
      %p98 = scmp.ne.s32.totalorder %s90, %s92
      %p99 = scmp.eq.s32.totalorder %s19, 3
      %p100 = por %p98, %p99
      %p101 = scmp.ne.s32.totalorder %s92, %s93
      %p102 = scmp.eq.s32.totalorder %s19, 0
      %p103 = por %p101, %p102
      %p104 = scmp.ne.s32.totalorder %s92, %s93
      %p105 = scmp.eq.s32.totalorder %s20, 3
      %p106 = por %p104, %p105
      %p108 = scmp.ne.s32.totalorder %s93, %s107
      %p109 = scmp.eq.s32.totalorder %s20, 0
      %p110 = por %p108, %p109
      %s112 = sadd.s32 %s111, 1
      %p115 = scmp.eq.s32.totalorder %s14, 3
      %p116 = scmp.ne.s32.totalorder %s111, %s113
      %p117 = scmp.eq.s32.totalorder %s14, 0
      %p118 = por %p116, %p117
      %p119 = scmp.ne.s32.totalorder %s111, %s113
      %p120 = scmp.eq.s32.totalorder %s19, 3
      %p121 = por %p119, %p120
      %p122 = scmp.ne.s32.totalorder %s113, %s114
      %p123 = scmp.eq.s32.totalorder %s19, 0
      %p124 = por %p122, %p123
      %p125 = scmp.ne.s32.totalorder %s113, %s114
      %p126 = scmp.eq.s32.totalorder %s20, 3
      %p127 = por %p125, %p126
      %p129 = scmp.ne.s32.totalorder %s114, %s128
      %p130 = scmp.eq.s32.totalorder %s20, 0
      %p131 = por %p129, %p130
      %s132 = ssub.s32 %s14, %s21
      %p133 = scmp.eq.s32.totalorder %s132, 0
      %s135 = sadd.s32 %s134, 1
      %s136 = scalar_select %p133, %s134, %s135
      %p139 = pneg %p133
      %p140 = scmp.eq.s32.totalorder %s14, 3
      %p141 = por %p139, %p140
      %p142 = scmp.ne.s32.totalorder %s134, %s137
      %p143 = scmp.eq.s32.totalorder %s14, 0
      %p144 = por %p142, %p143
      %p145 = scmp.ne.s32.totalorder %s134, %s137
      %p146 = scmp.eq.s32.totalorder %s19, 3
      %p147 = por %p145, %p146
      %p148 = scmp.ne.s32.totalorder %s137, %s138
      %p149 = scmp.eq.s32.totalorder %s19, 0
      %p150 = por %p148, %p149
      %p151 = scmp.ne.s32.totalorder %s137, %s138
      %p152 = scmp.eq.s32.totalorder %s20, 3
      %p153 = por %p151, %p152
      %p155 = scmp.ne.s32.totalorder %s138, %s154
      %p156 = scmp.eq.s32.totalorder %s20, 0
      %p157 = por %p155, %p156
      %p158 = scmp.le.s32.totalorder 1, %s14
      %p159 = scmp.lt.s32.totalorder %s14, 5
      %p160 = pnand %p158, %p159
      %p161 = pneg %p160
      // Predicated region
      $region9: #{tpu_custom_call.1} parent=5 // pred_check
        _
      $region10: #{tpu_custom_call.1} parent=5 // pred_check_branch
        %163 = sbr.rel (%p160) target = $region12
      $region11: #{tpu_custom_call.1} parent=5 // pred_region
        %s164 = ssub.s32 %s14, 1
        // Predicated region
        $region13: #{tpu_custom_call.1} parent=11 // pred_check
          %p165 = pneg %p61
        $region14: #{tpu_custom_call.1} parent=11 // pred_check_branch
          %167 = sbr.rel (%p165) target = $region16
        $region15: #{tpu_custom_call.1} parent=11 // pred_region
          _
        $region16: #{tpu_custom_call.1} parent=11 // pred_fallthru
          _
        // Predicated region
        $region17: #{tpu_custom_call.1} parent=11 // pred_check
          %p168 = pneg %p82
        $region18: #{tpu_custom_call.1} parent=11 // pred_check_branch
          %170 = sbr.rel (%p168) target = $region20
        $region19: #{tpu_custom_call.1} parent=11 // pred_region
          _
        $region20: #{tpu_custom_call.1} parent=11 // pred_fallthru
          _
        // Predicated region
        $region21: #{tpu_custom_call.1} parent=11 // pred_check
          %p171 = pneg %p103
        $region22: #{tpu_custom_call.1} parent=11 // pred_check_branch
          %173 = sbr.rel (%p171) target = $region24
        $region23: #{tpu_custom_call.1} parent=11 // pred_region
          _
        $region24: #{tpu_custom_call.1} parent=11 // pred_fallthru
          _
        // Predicated region
        $region25: #{tpu_custom_call.1} parent=11 // pred_check
          %p174 = pneg %p124
        $region26: #{tpu_custom_call.1} parent=11 // pred_check_branch
          %176 = sbr.rel (%p174) target = $region28
        $region27: #{tpu_custom_call.1} parent=11 // pred_region
          _
        $region28: #{tpu_custom_call.1} parent=11 // pred_fallthru
          _
      $region12: #{tpu_custom_call.1} parent=5 // pred_fallthru
        _
      %p177 = scmp.lt.s32.totalorder %s14, 4
      // Predicated region
      $region29: #{tpu_custom_call.1} parent=5 // pred_check
        %p178 = pneg %p177
      $region30: #{tpu_custom_call.1} parent=5 // pred_check_branch
        %180 = sbr.rel (%p178) target = $region32
      $region31: #{tpu_custom_call.1} parent=5 // pred_region
        // Predicated region
        $region33: #{tpu_custom_call.1} parent=31 // pred_check
          %p181 = pneg %p34
        $region34: #{tpu_custom_call.1} parent=31 // pred_check_branch
          %183 = sbr.rel (%p181) target = $region36
        $region35: #{tpu_custom_call.1} parent=31 // pred_region
          %s184 = smul.u32 2, %s14
          %p185 = scmp.lt.s32.totalorder %s184, 7
          %s186 = scalar_select %p185, %s184, 7
          %s187 = smul.addr %s186, 8
          %s188 = scalar_lea.vmem %s0, %s187
          %s189 = smul.u32 2, %s14
        $region36: #{tpu_custom_call.1} parent=31 // pred_fallthru
          _
      $region32: #{tpu_custom_call.1} parent=5 // pred_fallthru
        _
      %p190 = scmp.le.s32.totalorder 1, %s14
      %p191 = scmp.lt.s32.totalorder %s14, 5
      %p192 = pnand %p190, %p191
      %p193 = pneg %p192
      // Predicated region
      $region37: #{tpu_custom_call.1} parent=5 // pred_check
        _
      $region38: #{tpu_custom_call.1} parent=5 // pred_check_branch
        %195 = sbr.rel (%p192) target = $region40
      $region39: #{tpu_custom_call.1} parent=5 // pred_region
        %s196 = ssub.s32 %s14, 1
        %s197 = smul.u32 2, %s19
        %p198 = scmp.lt.s32.totalorder %s197, 7
        %s199 = scalar_select %p198, %s197, 7
        %s200 = smul.addr %s199, 8
        %s201 = scalar_lea.vmem %s0, %s200
        %p202 = pneg %p40
        %p203 = pneg %p37
        %p204 = pneg %p61
        %p205 = pneg %p58
        %p206 = pneg %p82
        %p207 = pneg %p79
        %p208 = pneg %p103
        %p209 = pneg %p100
        %p210 = pneg %p124
        %p211 = pneg %p121
        %p212 = pneg %p150
        %p213 = pneg %p147
        %s214 = sand.u32 %s137, 1
        %s215 = scalar_lea.sflag [#allocation3], %s214
        %s216 = sand.u32 %s137, 1
        %s217 = smul.addr %s216, 32
        %s218 = scalar_lea.vmem [#allocation2], %s217
        %s219 = smul.u32 2, %s19
        %p220 = scmp.lt.s32.totalorder %s219, 7
        %s221 = scalar_select %p220, %s219, 7
        %s222 = smul.addr %s221, 8
        %s223 = scalar_lea.vmem %s0, %s222
        %s224 = smul.u32 2, %s19
        %s225 = smul.u32 2, %s19
        %v226 = vld [vmem:[%s223] sm:$0xff]
        %v227 = vld [vmem:[%s223 + $0x8] sm:$0xff]
        %v228 = vld [vmem:[%s4] sm:$0x3]
        %v229 = vld [vmem:[%s1] sm:$0xff]
        %v230 = vld [vmem:[%s1 + $0x8] sm:$0xff]
        %v231 = vld [vmem:[%s1 + $0x10] sm:$0xff]
        %v232 = vld [vmem:[%s1 + $0x18] sm:$0xff]
        %v233 = vld [vmem:[%s1 + $0x20] sm:$0xff]
        %v234 = vld [vmem:[%s1 + $0x28] sm:$0xff]
        %v235 = vld [vmem:[%s1 + $0x30] sm:$0xff]
        %v236 = vld [vmem:[%s1 + $0x38] sm:$0xff]
        %v237 = vld [vmem:[%s1 + $0x40] sm:$0xff]
        %v238 = vld [vmem:[%s1 + $0x48] sm:$0xff]
        %v239 = vld [vmem:[%s1 + $0x50] sm:$0xff]
        %v240 = vld [vmem:[%s1 + $0x58] sm:$0xff]
        %v241 = vld [vmem:[%s1 + $0x60] sm:$0xff]
        %v242 = vld [vmem:[%s1 + $0x68] sm:$0xff]
        %v243 = vld [vmem:[%s1 + $0x70] sm:$0xff]
        %v244 = vld [vmem:[%s1 + $0x78] sm:$0xff]
        %v246 = vlaneseq
        %v247 = vshrl.u32 %v246, 7
        %v248 = vsub.s32 0, %v247
        %v249 = vrot.slane %v228, %v248
        %251 = vmatprep.subr.mxu0 0.0
        %252 = vmatpush1.msra.mxu0 %v244
        %253 = vmatprep.subr.mxu0 0.0
        %254 = vmatpush1.msra.mxu0 %v243
        %255 = vmatprep.subr.mxu0 0.0
        %256 = vmatpush1.msra.mxu0 %v242
        %257 = vmatprep.subr.mxu0 0.0
        %258 = vmatpush1.msra.mxu0 %v241
        %259 = vmatprep.subr.mxu0 0.0
        %260 = vmatpush1.msra.mxu0 %v240
        %261 = vmatprep.subr.mxu0 0.0
        %262 = vmatpush1.msra.mxu0 %v239
        %263 = vmatprep.subr.mxu0 0.0
        %264 = vmatpush1.msra.mxu0 %v238
        %265 = vmatprep.subr.mxu0 0.0
        %266 = vmatpush1.msra.mxu0 %v237
        %267 = vmatprep.subr.mxu0 0.0
        %268 = vmatpush1.msra.mxu0 %v236
        %269 = vmatprep.subr.mxu0 0.0
        %270 = vmatpush1.msra.mxu0 %v235
        %271 = vmatprep.subr.mxu0 0.0
        %272 = vmatpush1.msra.mxu0 %v234
        %273 = vmatprep.subr.mxu0 0.0
        %274 = vmatpush1.msra.mxu0 %v233
        %275 = vmatprep.subr.mxu0 0.0
        %276 = vmatpush1.msra.mxu0 %v232
        %277 = vmatprep.subr.mxu0 0.0
        %278 = vmatpush1.msra.mxu0 %v231
        %279 = vmatprep.subr.mxu0 0.0
        %280 = vmatpush1.msra.mxu0 %v230
        %281 = vmatprep.subr.mxu0 0.0
        %282 = vmatpush1.msra.mxu0 %v229
        %283 = vmatprep.subr.mxu0 0.0
        %284 = vmatpush2.msra.mxu0 0.0
        %285 = vmatprep.subr.mxu0 0.0
        %286 = vmatpush2.msra.mxu0 0.0
        %287 = vmatprep.subr.mxu0 0.0
        %288 = vmatpush2.msra.mxu0 0.0
        %289 = vmatprep.subr.mxu0 0.0
        %290 = vmatpush2.msra.mxu0 0.0
        %291 = vmatprep.subr.mxu0 0.0
        %292 = vmatpush2.msra.mxu0 0.0
        %293 = vmatprep.subr.mxu0 0.0
        %294 = vmatpush2.msra.mxu0 0.0
        %295 = vmatprep.subr.mxu0 0.0
        %296 = vmatpush2.msra.mxu0 0.0
        %297 = vmatprep.subr.mxu0 0.0
        %298 = vmatpush2.msra.mxu0 0.0
        %299 = vmatprep.subr.mxu0 0.0
        %300 = vmatpush2.msra.mxu0 0.0
        %301 = vmatprep.subr.mxu0 0.0
        %302 = vmatpush2.msra.mxu0 0.0
        %303 = vmatprep.subr.mxu0 0.0
        %304 = vmatpush2.msra.mxu0 0.0
        %305 = vmatprep.subr.mxu0 0.0
        %306 = vmatpush2.msra.mxu0 0.0
        %307 = vmatprep.subr.mxu0 0.0
        %308 = vmatpush2.msra.mxu0 0.0
        %309 = vmatprep.subr.mxu0 0.0
        %310 = vmatpush2.msra.mxu0 0.0
        %311 = vmatprep.subr.mxu0 0.0
        %312 = vmatpush2.msra.mxu0 0.0
        %313 = vmatprep.subr.mxu0 0.0
        %314 = vmatpush2.msra.mxu0 0.0
        %315 = vmatprep.mubr.f32.mxu0 0.0
        %316 = vmatmul.mubr.f32.gmra.mxu0 %v226
        %v317 = vpop.f32.mrf.mxu0
        %v318 = vadd.f32 %v249, %v317
        %v319 = vpop.f32.mrf.mxu0
        %320 = vmatprep.mubr.f32.mxu0 0.0
        %321 = vmatmul.mubr.f32.gmra.mxu0 %v227
        %v322 = vpop.f32.mrf.mxu0
        %v323 = vadd.f32 %v249, %v322
        %v324 = vpop.f32.mrf.mxu0
        %325 = vdwg.mxu0
        %v326 = vmax.f32 %v318, 0.0
        %v327 = vmax.f32 %v323, 0.0
        %v328 = vld [vmem:[%s2] sm:$0xff]
        %v329 = vld [vmem:[%s2 + $0x8] sm:$0xff]
        %v330 = vld [vmem:[%s2 + $0x10] sm:$0xff]
        %v331 = vld [vmem:[%s2 + $0x18] sm:$0xff]
        %332 = vrot.lane.b32.xlu0 %v249, 96
        %v333 = vpop.permute.xlu0 %332
        %vm335 = vcmask 261120
        %v337 = vsel %vm335, %v326, 0
        %v340 = vsel %vm335, %v327, 0
        %342 = vmatprep.subr.mxu0 0.0
        %343 = vmatpush1.msra.mxu0 0.0
        %344 = vmatprep.subr.mxu0 0.0
        %345 = vmatpush1.msra.mxu0 0.0
        %346 = vmatprep.subr.mxu0 0.0
        %347 = vmatpush1.msra.mxu0 0.0
        %348 = vmatprep.subr.mxu0 0.0
        %349 = vmatpush1.msra.mxu0 0.0
        %350 = vmatprep.subr.mxu0 0.0
        %351 = vmatpush1.msra.mxu0 0.0
        %352 = vmatprep.subr.mxu0 0.0
        %353 = vmatpush1.msra.mxu0 0.0
        %354 = vmatprep.subr.mxu0 0.0
        %355 = vmatpush1.msra.mxu0 0.0
        %356 = vmatprep.subr.mxu0 0.0
        %357 = vmatpush1.msra.mxu0 0.0
        %358 = vmatprep.subr.mxu0 0.0
        %359 = vmatpush1.msra.mxu0 0.0
        %360 = vmatprep.subr.mxu0 0.0
        %361 = vmatpush1.msra.mxu0 0.0
        %362 = vmatprep.subr.mxu0 0.0
        %363 = vmatpush1.msra.mxu0 0.0
        %364 = vmatprep.subr.mxu0 0.0
        %365 = vmatpush1.msra.mxu0 0.0
        %366 = vmatprep.subr.mxu0 0.0
        %367 = vmatpush1.msra.mxu0 %v331
        %368 = vmatprep.subr.mxu0 0.0
        %369 = vmatpush1.msra.mxu0 %v330
        %370 = vmatprep.subr.mxu0 0.0
        %371 = vmatpush1.msra.mxu0 %v329
        %372 = vmatprep.subr.mxu0 0.0
        %373 = vmatpush1.msra.mxu0 %v328
        %374 = vmatprep.subr.mxu0 0.0
        %375 = vmatpush2.msra.mxu0 0.0
        %376 = vmatprep.subr.mxu0 0.0
        %377 = vmatpush2.msra.mxu0 0.0
        %378 = vmatprep.subr.mxu0 0.0
        %379 = vmatpush2.msra.mxu0 0.0
        %380 = vmatprep.subr.mxu0 0.0
        %381 = vmatpush2.msra.mxu0 0.0
        %382 = vmatprep.subr.mxu0 0.0
        %383 = vmatpush2.msra.mxu0 0.0
        %384 = vmatprep.subr.mxu0 0.0
        %385 = vmatpush2.msra.mxu0 0.0
        %386 = vmatprep.subr.mxu0 0.0
        %387 = vmatpush2.msra.mxu0 0.0
        %388 = vmatprep.subr.mxu0 0.0
        %389 = vmatpush2.msra.mxu0 0.0
        %390 = vmatprep.subr.mxu0 0.0
        %391 = vmatpush2.msra.mxu0 0.0
        %392 = vmatprep.subr.mxu0 0.0
        %393 = vmatpush2.msra.mxu0 0.0
        %394 = vmatprep.subr.mxu0 0.0
        %395 = vmatpush2.msra.mxu0 0.0
        %396 = vmatprep.subr.mxu0 0.0
        %397 = vmatpush2.msra.mxu0 0.0
        %398 = vmatprep.subr.mxu0 0.0
        %399 = vmatpush2.msra.mxu0 0.0
        %400 = vmatprep.subr.mxu0 0.0
        %401 = vmatpush2.msra.mxu0 0.0
        %402 = vmatprep.subr.mxu0 0.0
        %403 = vmatpush2.msra.mxu0 0.0
        %404 = vmatprep.subr.mxu0 0.0
        %405 = vmatpush2.msra.mxu0 0.0
        %406 = vmatprep.mubr.f32.mxu0 0.0
        %407 = vmatmul.mubr.f32.gmra.mxu0 %v337
        %v408 = vpop.f32.mrf.mxu0
        %v409 = vadd.f32 %v333, %v408
        %v410 = vpop.f32.mrf.mxu0
        %411 = vmatprep.mubr.f32.mxu0 0.0
        %412 = vmatmul.mubr.f32.gmra.mxu0 %v340
        %v413 = vpop.f32.mrf.mxu0
        %v414 = vadd.f32 %v333, %v413
        %v415 = vpop.f32.mrf.mxu0
        %416 = vdwg.mxu0
        %v417 = vmax.f32 %v409, 0.0
        %v418 = vmax.f32 %v414, 0.0
        %v419 = vld [vmem:[%s3] sm:$0xff]
        %v420 = vld [vmem:[%s3 + $0x8] sm:$0xff]
        %v421 = vld [vmem:[%s3 + $0x10] sm:$0xff]
        %v422 = vld [vmem:[%s3 + $0x18] sm:$0xff]
        %v423 = vld [vmem:[%s3 + $0x20] sm:$0xff]
        %v424 = vld [vmem:[%s3 + $0x28] sm:$0xff]
        %v425 = vld [vmem:[%s3 + $0x30] sm:$0xff]
        %v426 = vld [vmem:[%s3 + $0x38] sm:$0xff]
        %v427 = vlaneseq
        %v428 = vshrl.u32 %v427, 7
        %v429 = vsub.s32 1, %v428
        %v430 = vrot.slane %v228, %v429
        %431 = vrot.lane.b32.xlu0 %v249, 32
        %v432 = vpop.permute.xlu0 %431
        %433 = vrot.lane.b32.xlu0 %v430, 32
        %v434 = vpop.permute.xlu0 %433
        %v435 = vsel %vm335, %v432, %v434
        %vm437 = vcmask 523264
        %v439 = vsel %vm437, %v417, 0
        %v442 = vsel %vm437, %v418, 0
        %444 = vmatprep.subr.mxu0 0.0
        %445 = vmatpush1.msra.mxu0 0.0
        %446 = vmatprep.subr.mxu0 0.0
        %447 = vmatpush1.msra.mxu0 0.0
        %448 = vmatprep.subr.mxu0 0.0
        %449 = vmatpush1.msra.mxu0 0.0
        %450 = vmatprep.subr.mxu0 0.0
        %451 = vmatpush1.msra.mxu0 0.0
        %452 = vmatprep.subr.mxu0 0.0
        %453 = vmatpush1.msra.mxu0 0.0
        %454 = vmatprep.subr.mxu0 0.0
        %455 = vmatpush1.msra.mxu0 0.0
        %456 = vmatprep.subr.mxu0 0.0
        %457 = vmatpush1.msra.mxu0 0.0
        %458 = vmatprep.subr.mxu0 0.0
        %459 = vmatpush1.msra.mxu0 0.0
        %460 = vmatprep.subr.mxu0 0.0
        %461 = vmatpush1.msra.mxu0 %v426
        %462 = vmatprep.subr.mxu0 0.0
        %463 = vmatpush1.msra.mxu0 %v425
        %464 = vmatprep.subr.mxu0 0.0
        %465 = vmatpush1.msra.mxu0 %v424
        %466 = vmatprep.subr.mxu0 0.0
        %467 = vmatpush1.msra.mxu0 %v423
        %468 = vmatprep.subr.mxu0 0.0
        %469 = vmatpush1.msra.mxu0 %v422
        %470 = vmatprep.subr.mxu0 0.0
        %471 = vmatpush1.msra.mxu0 %v421
        %472 = vmatprep.subr.mxu0 0.0
        %473 = vmatpush1.msra.mxu0 %v420
        %474 = vmatprep.subr.mxu0 0.0
        %475 = vmatpush1.msra.mxu0 %v419
        %476 = vmatprep.subr.mxu0 0.0
        %477 = vmatpush2.msra.mxu0 0.0
        %478 = vmatprep.subr.mxu0 0.0
        %479 = vmatpush2.msra.mxu0 0.0
        %480 = vmatprep.subr.mxu0 0.0
        %481 = vmatpush2.msra.mxu0 0.0
        %482 = vmatprep.subr.mxu0 0.0
        %483 = vmatpush2.msra.mxu0 0.0
        %484 = vmatprep.subr.mxu0 0.0
        %485 = vmatpush2.msra.mxu0 0.0
        %486 = vmatprep.subr.mxu0 0.0
        %487 = vmatpush2.msra.mxu0 0.0
        %488 = vmatprep.subr.mxu0 0.0
        %489 = vmatpush2.msra.mxu0 0.0
        %490 = vmatprep.subr.mxu0 0.0
        %491 = vmatpush2.msra.mxu0 0.0
        %492 = vmatprep.subr.mxu0 0.0
        %493 = vmatpush2.msra.mxu0 0.0
        %494 = vmatprep.subr.mxu0 0.0
        %495 = vmatpush2.msra.mxu0 0.0
        %496 = vmatprep.subr.mxu0 0.0
        %497 = vmatpush2.msra.mxu0 0.0
        %498 = vmatprep.subr.mxu0 0.0
        %499 = vmatpush2.msra.mxu0 0.0
        %500 = vmatprep.subr.mxu0 0.0
        %501 = vmatpush2.msra.mxu0 0.0
        %502 = vmatprep.subr.mxu0 0.0
        %503 = vmatpush2.msra.mxu0 0.0
        %504 = vmatprep.subr.mxu0 0.0
        %505 = vmatpush2.msra.mxu0 0.0
        %506 = vmatprep.subr.mxu0 0.0
        %507 = vmatpush2.msra.mxu0 0.0
        %508 = vmatprep.mubr.f32.mxu0 0.0
        %509 = vmatmul.mubr.f32.gmra.mxu0 %v439
        %v510 = vpop.f32.mrf.mxu0
        %v511 = vadd.f32 %v435, %v510
        %v512 = vpop.f32.mrf.mxu0
        %513 = vmatprep.mubr.f32.mxu0 0.0
        %514 = vmatmul.mubr.f32.gmra.mxu0 %v442
        %v515 = vpop.f32.mrf.mxu0
        %v516 = vadd.f32 %v435, %v515
        %v517 = vpop.f32.mrf.mxu0
        %518 = vdwg.mxu0
        %521 = vrot.lane.b32.xlu0 %v409, 32
        %v522 = vpop.permute.xlu0 %521
        %523 = vrot.lane.b32.xlu0 %v414, 32
        %v524 = vpop.permute.xlu0 %523
        %529 = vrot.lane.b32.xlu0 %v511, 96
        %v530 = vpop.permute.xlu0 %529
        %531 = vrot.lane.b32.xlu0 %v516, 96
        %v532 = vpop.permute.xlu0 %531
        %v535 = vsel %vm335, %v318, %v522
        %v536 = vsel %vm335, %v323, %v524
        %vm537 = vcmask 785408
        %v538 = vsel %vm537, %v535, %v530
        %v539 = vsel %vm537, %v536, %v532
        %540 = vst [vmem:[%s218] sm:$0xff] %v538
        %541 = vst.msk [vmem:[%s218 + $0x8] sm:$0xff] %vm335, %v530
        %542 = vst [vmem:[%s218 + $0x10] sm:$0xff] %v539
        %543 = vst.msk [vmem:[%s218 + $0x18] sm:$0xff] %vm335, %v532
        %s544 = sand.u32 %s137, 1
        %s545 = scalar_lea.sflag [#allocation3], %s544
        %s546 = sand.u32 %s137, 1
        %s547 = smul.addr %s546, 32
        %s548 = scalar_lea.vmem [#allocation2], %s547
        // Predicated region
        $region41: #{tpu_custom_call.1} parent=39 // pred_check
          %p549 = pneg %p147
        $region42: #{tpu_custom_call.1} parent=39 // pred_check_branch
          %551 = sbr.rel (%p549) target = $region44
        $region43: #{tpu_custom_call.1} parent=39 // pred_region
          %s552 = smul.u32 2, %s19
          %s554 = ssub.s32 512, 512
          %555 = vsyncadd %s545, %s554
          %s556 = smul.addr %s552, 2
          %s557 = smul.addr %s556, 128
          %s558 = scalar_lea.hbm %s5, %s557
          %s559 = sshll.u32 %s548, 4
          %s560 = int_to_ptr.vmem [resolvable:$true] %s559
          %565 = dma.vmem_to_hbm [thread:$0]  %s560, 512, %s558, %s545, 256, 256, 16
        $region44: #{tpu_custom_call.1} parent=39 // pred_fallthru
          _
      $region40: #{tpu_custom_call.1} parent=5 // pred_fallthru
        _
      %p566 = scmp.le.s32.totalorder 2, %s14
      // Predicated region
      $region45: #{tpu_custom_call.1} parent=5 // pred_check
        %p567 = pneg %p566
      $region46: #{tpu_custom_call.1} parent=5 // pred_check_branch
        %569 = sbr.rel (%p567) target = $region48
      $region47: #{tpu_custom_call.1} parent=5 // pred_region
        %s570 = ssub.s32 %s14, 2
        // Predicated region
        $region49: #{tpu_custom_call.1} parent=47 // pred_check
          %p571 = pneg %p153
        $region50: #{tpu_custom_call.1} parent=47 // pred_check_branch
          %573 = sbr.rel (%p571) target = $region52
        $region51: #{tpu_custom_call.1} parent=47 // pred_region
          %s574 = sand.u32 %s138, 1
          %s575 = scalar_lea.sflag [#allocation3], %s574
          %s576 = sand.u32 %s138, 1
          %s577 = smul.addr %s576, 32
          %s578 = scalar_lea.vmem [#allocation2], %s577
          %579 = dma.done %s575, 512
        $region52: #{tpu_custom_call.1} parent=47 // pred_fallthru
          _
      $region48: #{tpu_custom_call.1} parent=5 // pred_fallthru
        _
    $region6: #{tpu_custom_call.1} parent=1 // loop_footer
      %s18 = sadd.s32 1, %s14
    $region7: #{tpu_custom_call.1} parent=1 // loop_footer_branch
      %13 = sbr.rel target = $region3
    $region8: #{tpu_custom_call.1} parent=1 // loop_exit
      _
    %580 = vsyncpa [#allocation3], 1
    %s581 = scalar_lea.sflag [#allocation3], 1
    %582 = vsyncpa %s581, 1

</llo_original>
